<compile_context>
chip_gen: v7x
topology: tpu7x:2x2x1
jax: 0.10.0
libtpu: 0.0.40
codegen_flags: <defaults>
</compile_context>

<pallas_src>
import functools

import jax
import jax.numpy as jnp
from jax.experimental import pallas as pl
from jax.experimental.pallas import tpu as pltpu


def _scu_kernel(patches_ref, w_ref, gb_ref, o_ref, *, nb, eps):
    """Fused conv(im2col, bias folded) + ReLU + GroupNorm(C, C) for `nb` samples.

    patches_ref : (nb, K+1, HW)  im2col patches; last K-row is 1.0 (folds conv bias)
    w_ref       : (Cout, K+1)    conv weights; last column is the conv bias
    gb_ref      : (Cout, 2)      columns = [gamma, beta]
    o_ref       : (nb, Cout, HW) output, lane-dense last dim (natively NCHW-flattened)
    """
    hw = o_ref.shape[-1]
    inv_hw = 1.0 / hw

    wmat = w_ref[...]                                   # native dtype; MXU eats bf16/f32 directly
    gb = gb_ref[...].astype(jnp.float32)                # (Cout, 2)
    gamma = gb[:, 0:1]                                  # (Cout, 1)
    beta = gb[:, 1:2]                                   # (Cout, 1)

    for i in range(nb):                                 # static unroll over samples in the block
        # Single fused matmul: (Cout, K+1) @ (K+1, HW) -> (Cout, HW), f32 accumulation.
        acc = jnp.dot(wmat, patches_ref[i], preferred_element_type=jnp.float32)
        acc = jnp.maximum(acc, 0.0)                     # ReLU

        # GroupNorm with num_groups == num_channels: per-channel stats over spatial
        # (the lane dim), single pass: var = E[x^2] - mean^2; affine folded into one FMA.
        s1 = jnp.sum(acc, axis=1, keepdims=True)        # (Cout, 1)
        s2 = jnp.sum(acc * acc, axis=1, keepdims=True)  # (Cout, 1)
        mean = s1 * inv_hw
        var = jnp.maximum(s2 * inv_hw - mean * mean, 0.0)
        inv = jax.lax.rsqrt(var + eps)
        scale = gamma * inv
        shift = beta - mean * scale
        o_ref[i] = (acc * scale + shift).astype(o_ref.dtype)


def _pick_batch_block(n, cap=8):
    """Largest divisor of n (<= cap) that still leaves >= 2 grid steps (v7x has 2 TCs)."""
    if n <= 1:
        return 1
    best = 1
    for nb in range(1, min(cap, n) + 1):
        if n % nb == 0 and n // nb >= 2:
            best = nb
    return best


def short_cut_unit(x_nchw, w_oihw, bias, gamma, beta, *, pad=1, eps=1e-5):
    """Forward pass of Short_cut_unit (bn=False, IN=False, DR=False, LN=True)."""
    N, Cin, H, W = x_nchw.shape
    Cout, _, KH, KW = w_oihw.shape
    Hout = H + 2 * pad - KH + 1
    Wout = W + 2 * pad - KW + 1
    HW = Hout * Wout
    Kdim = KH * KW * Cin
    Kp = Kdim + 1                      # +1 ones-row folds the conv bias into the matmul
    dtype = x_nchw.dtype

    # --- wrapper glue (XLA, outside the hot loop): im2col laid out so a single
    # (Cout, Kp) @ (Kp, HW) matmul emits the NCHW output directly (lane-dense HW).
    x_pad = jnp.pad(x_nchw, ((0, 0), (0, 0), (pad, pad), (pad, pad)))
    taps = []
    for kh in range(KH):
        for kw in range(KW):
            taps.append(x_pad[:, :, kh:kh + Hout, kw:kw + Wout].reshape(N, Cin, HW))
    taps.append(jnp.ones((N, 1, HW), dtype))
    patches = jnp.concatenate(taps, axis=1)                              # (N, Kp, HW)

    # Weight row ordering must match the tap ordering: index = (kh*KW + kw)*Cin + c.
    wmat = jnp.transpose(w_oihw, (0, 2, 3, 1)).reshape(Cout, Kdim)       # (Cout, Kdim)
    wmat = jnp.concatenate([wmat, bias.reshape(Cout, 1)], axis=1).astype(dtype)  # (Cout, Kp)

    gb = jnp.stack([gamma, beta], axis=1).astype(jnp.float32)            # (Cout, 2)

    nb = _pick_batch_block(N)
    grid = (N // nb,)

    # Explicit VMEM budget (double-buffered input/output blocks + weights, with headroom);
    # matters when this kernel is scaled up on v7x's 64 MiB VMEM.
    itemsize = jnp.dtype(dtype).itemsize
    blk_bytes = (nb * Kp * HW + nb * Cout * HW + Cout * Kp) * itemsize + Cout * 2 * 4
    vmem_limit = int(min(max(4 * blk_bytes, 16 << 20), 48 << 20))

    kernel = functools.partial(_scu_kernel, nb=nb, eps=eps)

    out_flat = pl.pallas_call(
        kernel,
        out_shape=jax.ShapeDtypeStruct((N, Cout, HW), dtype),
        grid=grid,
        in_specs=[
            pl.BlockSpec((nb, Kp, HW), lambda n: (n, 0, 0)),
            pl.BlockSpec((Cout, Kp), lambda n: (0, 0)),
            pl.BlockSpec((Cout, 2), lambda n: (0, 0)),
        ],
        out_specs=pl.BlockSpec((nb, Cout, HW), lambda n: (n, 0, 0)),
        compiler_params=pltpu.CompilerParams(
            dimension_semantics=("parallel",),
            vmem_limit_bytes=vmem_limit),
    )(patches, wmat, gb)

    # Free metadata reshape (row-major compatible): (N, Cout, H*W) -> (N, Cout, H, W).
    return out_flat.reshape(N, Cout, Hout, Wout)


def _ref_forward(x, w, b, gamma, beta):
    """Pure-JAX reference replicating the PyTorch module semantics."""
    y = jax.lax.conv_general_dilated(
        x, w, window_strides=(1, 1), padding=((1, 1), (1, 1)),
        dimension_numbers=("NCHW", "OIHW", "NCHW"))
    y = y + b[None, :, None, None]
    y = jnp.maximum(y, 0.0)
    mean = jnp.mean(y, axis=(2, 3), keepdims=True)
    var = jnp.mean((y - mean) ** 2, axis=(2, 3), keepdims=True)
    yn = (y - mean) * jax.lax.rsqrt(var + 1e-5)
    return yn * gamma[None, :, None, None] + beta[None, :, None, None]


if __name__ == "__main__":
    # Module defaults: in_ch=16, out_ch=16, kernel=3, pad=1, LN=True
    N, Cin, Cout, H, W, K = 2, 16, 16, 16, 16, 3

    key = jax.random.PRNGKey(0)
    kx, kw, kb = jax.random.split(key, 3)

    x = jax.random.normal(kx, (N, Cin, H, W), dtype=jnp.float32)

    # PyTorch Conv2d default init: U(-1/sqrt(fan_in), +1/sqrt(fan_in))
    fan_in = Cin * K * K
    bound = 1.0 / (fan_in ** 0.5)
    w = jax.random.uniform(kw, (Cout, Cin, K, K), jnp.float32, -bound, bound)
    b = jax.random.uniform(kb, (Cout,), jnp.float32, -bound, bound)
    gamma = jnp.ones((Cout,), jnp.float32)   # GroupNorm affine init
    beta = jnp.zeros((Cout,), jnp.float32)

    out = jax.block_until_ready(short_cut_unit(x, w, b, gamma, beta))
    ref = jax.block_until_ready(_ref_forward(x, w, b, gamma, beta))

    assert out.shape == (N, Cout, H, W), out.shape
    max_err = float(jnp.max(jnp.abs(out - ref)))
    assert jnp.allclose(out, ref, atol=5e-4, rtol=5e-4), max_err

    print("KERNEL_OK")
</pallas_src>

<mosaic_0001>
module attributes {stable_mosaic.version = 11 : i64} {
  func.func @_scu_kernel(%arg0: i32, %arg1: memref<1x145x256xf32, #tpu.memory_space<vmem>>, %arg2: memref<16x145xf32, #tpu.memory_space<vmem>>, %arg3: memref<16x2xf32, #tpu.memory_space<vmem>>, %arg4: memref<1x16x256xf32, #tpu.memory_space<vmem>>) attributes {dimension_semantics = [#tpu.dimension_semantics<parallel>], iteration_bounds = array<i64: 2>, scalar_prefetch = 0 : i64, scratch_operands = 0 : i64, tpu.core_type = #tpu.core_type<tc>, window_params = [{transform_indices = @transform_0, window_bounds = array<i64: 1, 145, 256>}, {pipeline_mode = #tpu.pipeline_mode<synchronous>, transform_indices = @transform_1, window_bounds = array<i64: 16, 145>}, {pipeline_mode = #tpu.pipeline_mode<synchronous>, transform_indices = @transform_2, window_bounds = array<i64: 16, 2>}, {transform_indices = @transform_3, window_bounds = array<i64: 1, 16, 256>}]} {
    %c0 = arith.constant 0 : index
    %c0_0 = arith.constant 0 : index
    %0 = vector.load %arg2[%c0, %c0_0] : memref<16x145xf32, #tpu.memory_space<vmem>>, vector<16x145xf32>
    %c0_1 = arith.constant 0 : index
    %c0_2 = arith.constant 0 : index
    %1 = vector.load %arg3[%c0_1, %c0_2] : memref<16x2xf32, #tpu.memory_space<vmem>>, vector<16x2xf32>
    %2 = vector.extract_strided_slice %1 {offsets = [0, 0], sizes = [16, 1], strides = [1, 1]} : vector<16x2xf32> to vector<16x1xf32>
    %3 = vector.extract_strided_slice %1 {offsets = [0, 1], sizes = [16, 1], strides = [1, 1]} : vector<16x2xf32> to vector<16x1xf32>
    %c0_3 = arith.constant 0 : index
    %c0_4 = arith.constant 0 : index
    %c0_5 = arith.constant 0 : index
    %4 = vector.load %arg1[%c0_3, %c0_4, %c0_5] : memref<1x145x256xf32, #tpu.memory_space<vmem>>, vector<1x145x256xf32>
    %5 = vector.shape_cast %4 : vector<1x145x256xf32> to vector<145x256xf32>
    %cst = arith.constant dense<0.000000e+00> : vector<16x256xf32>
    %6 = tpu.matmul %0, %5, %cst {dimension_numbers = #tpu.dot_dimension_numbers<[1], [0], [0], [1], [0, 0, 1, 1], [], []>} : vector<16x145xf32>, vector<145x256xf32>, vector<16x256xf32> -> vector<16x256xf32>
    %cst_6 = arith.constant 0.000000e+00 : f32
    %7 = vector.broadcast %cst_6 : f32 to vector<16x256xf32>
    %8 = arith.maximumf %6, %7 : vector<16x256xf32>
    %cst_7 = arith.constant dense<0.000000e+00> : vector<16xf32>
    %9 = vector.multi_reduction <add>, %8, %cst_7 [1] : vector<16x256xf32> to vector<16xf32>
    %10 = vector.shape_cast %9 : vector<16xf32> to vector<16x1xf32>
    %11 = arith.mulf %8, %8 : vector<16x256xf32>
    %cst_8 = arith.constant dense<0.000000e+00> : vector<16xf32>
    %12 = vector.multi_reduction <add>, %11, %cst_8 [1] : vector<16x256xf32> to vector<16xf32>
    %13 = vector.shape_cast %12 : vector<16xf32> to vector<16x1xf32>
    %cst_9 = arith.constant 3.906250e-03 : f32
    %14 = vector.broadcast %cst_9 : f32 to vector<16x1xf32>
    %15 = arith.mulf %10, %14 : vector<16x1xf32>
    %cst_10 = arith.constant 3.906250e-03 : f32
    %16 = vector.broadcast %cst_10 : f32 to vector<16x1xf32>
    %17 = arith.mulf %13, %16 : vector<16x1xf32>
    %18 = arith.mulf %15, %15 : vector<16x1xf32>
    %19 = arith.subf %17, %18 : vector<16x1xf32>
    %cst_11 = arith.constant 0.000000e+00 : f32
    %20 = vector.broadcast %cst_11 : f32 to vector<16x1xf32>
    %21 = arith.maximumf %19, %20 : vector<16x1xf32>
    %cst_12 = arith.constant 9.99999974E-6 : f32
    %22 = vector.broadcast %cst_12 : f32 to vector<16x1xf32>
    %23 = arith.addf %21, %22 : vector<16x1xf32>
    %24 = math.rsqrt %23 : vector<16x1xf32>
    %25 = arith.mulf %2, %24 : vector<16x1xf32>
    %26 = arith.mulf %15, %25 : vector<16x1xf32>
    %27 = arith.subf %3, %26 : vector<16x1xf32>
    %28 = vector.broadcast %25 : vector<16x1xf32> to vector<16x256xf32>
    %29 = arith.mulf %8, %28 : vector<16x256xf32>
    %30 = vector.broadcast %27 : vector<16x1xf32> to vector<16x256xf32>
    %31 = arith.addf %29, %30 : vector<16x256xf32>
    %c0_13 = arith.constant 0 : index
    %c0_14 = arith.constant 0 : index
    %c0_15 = arith.constant 0 : index
    %32 = vector.load %arg4[%c0_13, %c0_14, %c0_15] : memref<1x16x256xf32, #tpu.memory_space<vmem>>, vector<1x16x256xf32>
    %33 = vector.shape_cast %32 : vector<1x16x256xf32> to vector<16x256xf32>
    %34 = vector.shape_cast %31 : vector<16x256xf32> to vector<1x16x256xf32>
    tpu.vector_store %arg4[%c0_13, %c0_14, %c0_15], %34 {strides = array<i32>} : memref<1x16x256xf32, #tpu.memory_space<vmem>>, vector<1x16x256xf32>,
    return
  }
  func.func @transform_0(%arg0: i32) -> (i32, i32, i32) {
    %c0_i32 = arith.constant 0 : i32
    %c0_i32_0 = arith.constant 0 : i32
    %c0_i32_1 = arith.constant 0 : i32
    return %arg0, %c0_i32, %c0_i32_0 : i32, i32, i32
  }
  func.func @transform_1(%arg0: i32) -> (i32, i32) {
    %c0_i32 = arith.constant 0 : i32
    %c0_i32_0 = arith.constant 0 : i32
    %c0_i32_1 = arith.constant 0 : i32
    return %c0_i32, %c0_i32_0 : i32, i32
  }
  func.func @transform_2(%arg0: i32) -> (i32, i32) {
    %c0_i32 = arith.constant 0 : i32
    %c0_i32_0 = arith.constant 0 : i32
    %c0_i32_1 = arith.constant 0 : i32
    return %c0_i32, %c0_i32_0 : i32, i32
  }
  func.func @transform_3(%arg0: i32) -> (i32, i32, i32) {
    %c0_i32 = arith.constant 0 : i32
    %c0_i32_0 = arith.constant 0 : i32
    %c0_i32_1 = arith.constant 0 : i32
    return %arg0, %c0_i32, %c0_i32_0 : i32, i32, i32
  }
}

</mosaic_0001>

<llo_original>
// kernel: tpu_custom_call.1
$region0: #{tpu_custom_call.1}
  #allocation0 [shape = 'u32[]', space=smem, size = 0x4, offset = 0x4, fixed_abs, tag = 'smem constant byte address 0x4 - core index']
  #allocation1 [shape = 'u32[144,128]{1,0:T(1,128)}', space=vmem, size = 0x12000, scoped, tag = 'internal scratch']
  %s0 = inlined_call_operand.vmem [shape: f32[2,145,256], index: 0, kind: input, shape index: {}]
  %s1 = inlined_call_operand.vmem [shape: f32[16,145], index: 1, kind: input, shape index: {}]
  %s2 = inlined_call_operand.vmem [shape: f32[16,2], index: 2, kind: input, shape index: {}]
  %s3 = inlined_call_operand.hbm [shape: f32[2,16,256], index: 3, kind: output, shape index: {}]
  %s4 = sld [smem:[#allocation0]]
  $region45: #{tpu_custom_call.1} parent=0
    _
  %s6 = ssub.s32 1, %s4
  %s7 = scalar_select 0, %s6, %s4
  $region1: #{tpu_custom_call.1} parent=0
    #allocation2 [shape = 'u8[32768]{0}', space=vmem, size = 0x8000, scoped, tag = 'output window, operand 0']
    #allocation3 [shape = 's32[2]{0}', space=sflag, size = 0x8, scoped, tag = 'scoped memory for tpu_custom_call.1']
    %8 = vsyncpa [#allocation3], 0
    %s9 = scalar_lea.sflag [#allocation3], 1
    %10 = vsyncpa %s9, 0
    loop: start=0, step=1, limit=4
    $region2: #{tpu_custom_call.1} parent=1 // loop_pre_header
      _
    $region3: #{tpu_custom_call.1} parent=1 // loop_header
      %s12 = sphi 0, %s16
      %p13 = scmp.ge.s32.totalorder %s12, 4
      %s22 = sphi 0, %s24
      %s25 = sphi 0, %s22
      %s26 = sphi 0, %s25
      %s42 = sphi 0, %s26
      %s46 = sphi 0, %s46
      %s48 = sphi 0, %s46
      %s49 = sphi 0, %s48
      %s63 = sphi 0, %s49
      %s67 = sphi 0, %s67
      %s69 = sphi 0, %s67
      %s70 = sphi 0, %s69
      %s84 = sphi 0, %s70
      %s90 = sphi 0, %s92
      %s93 = sphi 0, %s90
      %s94 = sphi 0, %s93
      %s110 = sphi 0, %s94
    $region4: #{tpu_custom_call.1} parent=1 // loop_header_branch
      %15 = sbr.rel (%p13) target = $region8
    $region5: #{tpu_custom_call.1} parent=1 // loop_body
      %s17 = ssub.s32 %s12, 1
      %s18 = ssub.s32 %s12, 2
      %s19 = sadd.s32 %s12, 1
      %s20 = ssub.s32 %s12, %s19
      %p21 = scmp.eq.s32.totalorder %s20, 0
      %s23 = sadd.s32 %s22, 1
      %s24 = scalar_select %p21, %s22, %s23
      %p27 = pneg %p21
      %p28 = scmp.eq.s32.totalorder %s12, 1
      %p29 = por %p27, %p28
      %p30 = scmp.ne.s32.totalorder %s22, %s25
      %p31 = scmp.eq.s32.totalorder %s12, 0
      %p32 = por %p30, %p31
      %p33 = scmp.ne.s32.totalorder %s22, %s25
      %p34 = scmp.eq.s32.totalorder %s17, 1
      %p35 = por %p33, %p34
      %p36 = scmp.ne.s32.totalorder %s25, %s26
      %p37 = scmp.eq.s32.totalorder %s17, 0
      %p38 = por %p36, %p37
      %p39 = scmp.ne.s32.totalorder %s25, %s26
      %p40 = scmp.eq.s32.totalorder %s18, 1
      %p41 = por %p39, %p40
      %p43 = scmp.ne.s32.totalorder %s26, %s42
      %p44 = scmp.eq.s32.totalorder %s18, 0
      %p45 = por %p43, %p44
      %s47 = sadd.s32 %s46, 1
      %p50 = scmp.eq.s32.totalorder %s12, 1
      %p51 = scmp.ne.s32.totalorder %s46, %s48
      %p52 = scmp.eq.s32.totalorder %s12, 0
      %p53 = por %p51, %p52
      %p54 = scmp.ne.s32.totalorder %s46, %s48
      %p55 = scmp.eq.s32.totalorder %s17, 1
      %p56 = por %p54, %p55
      %p57 = scmp.ne.s32.totalorder %s48, %s49
      %p58 = scmp.eq.s32.totalorder %s17, 0
      %p59 = por %p57, %p58
      %p60 = scmp.ne.s32.totalorder %s48, %s49
      %p61 = scmp.eq.s32.totalorder %s18, 1
      %p62 = por %p60, %p61
      %p64 = scmp.ne.s32.totalorder %s49, %s63
      %p65 = scmp.eq.s32.totalorder %s18, 0
      %p66 = por %p64, %p65
      %s68 = sadd.s32 %s67, 1
      %p71 = scmp.eq.s32.totalorder %s12, 1
      %p72 = scmp.ne.s32.totalorder %s67, %s69
      %p73 = scmp.eq.s32.totalorder %s12, 0
      %p74 = por %p72, %p73
      %p75 = scmp.ne.s32.totalorder %s67, %s69
      %p76 = scmp.eq.s32.totalorder %s17, 1
      %p77 = por %p75, %p76
      %p78 = scmp.ne.s32.totalorder %s69, %s70
      %p79 = scmp.eq.s32.totalorder %s17, 0
      %p80 = por %p78, %p79
      %p81 = scmp.ne.s32.totalorder %s69, %s70
      %p82 = scmp.eq.s32.totalorder %s18, 1
      %p83 = por %p81, %p82
      %p85 = scmp.ne.s32.totalorder %s70, %s84
      %p86 = scmp.eq.s32.totalorder %s18, 0
      %p87 = por %p85, %p86
      %s88 = ssub.s32 %s12, %s19
      %p89 = scmp.eq.s32.totalorder %s88, 0
      %s91 = sadd.s32 %s90, 1
      %s92 = scalar_select %p89, %s90, %s91
      %p95 = pneg %p89
      %p96 = scmp.eq.s32.totalorder %s12, 1
      %p97 = por %p95, %p96
      %p98 = scmp.ne.s32.totalorder %s90, %s93
      %p99 = scmp.eq.s32.totalorder %s12, 0
      %p100 = por %p98, %p99
      %p101 = scmp.ne.s32.totalorder %s90, %s93
      %p102 = scmp.eq.s32.totalorder %s17, 1
      %p103 = por %p101, %p102
      %p104 = scmp.ne.s32.totalorder %s93, %s94
      %p105 = scmp.eq.s32.totalorder %s17, 0
      %p106 = por %p104, %p105
      %p107 = scmp.ne.s32.totalorder %s93, %s94
      %p108 = scmp.eq.s32.totalorder %s18, 1
      %p109 = por %p107, %p108
      %p111 = scmp.ne.s32.totalorder %s94, %s110
      %p112 = scmp.eq.s32.totalorder %s18, 0
      %p113 = por %p111, %p112
      %p114 = scmp.le.s32.totalorder 1, %s12
      %p115 = scmp.lt.s32.totalorder %s12, 3
      %p116 = pnand %p114, %p115
      %p117 = pneg %p116
      // Predicated region
      $region9: #{tpu_custom_call.1} parent=5 // pred_check
        _
      $region10: #{tpu_custom_call.1} parent=5 // pred_check_branch
        %119 = sbr.rel (%p116) target = $region12
      $region11: #{tpu_custom_call.1} parent=5 // pred_region
        %s120 = ssub.s32 %s12, 1
        // Predicated region
        $region13: #{tpu_custom_call.1} parent=11 // pred_check
          %p121 = pneg %p59
        $region14: #{tpu_custom_call.1} parent=11 // pred_check_branch
          %123 = sbr.rel (%p121) target = $region16
        $region15: #{tpu_custom_call.1} parent=11 // pred_region
          _
        $region16: #{tpu_custom_call.1} parent=11 // pred_fallthru
          _
        // Predicated region
        $region17: #{tpu_custom_call.1} parent=11 // pred_check
          %p124 = pneg %p80
        $region18: #{tpu_custom_call.1} parent=11 // pred_check_branch
          %126 = sbr.rel (%p124) target = $region20
        $region19: #{tpu_custom_call.1} parent=11 // pred_region
          _
        $region20: #{tpu_custom_call.1} parent=11 // pred_fallthru
          _
      $region12: #{tpu_custom_call.1} parent=5 // pred_fallthru
        _
      %p127 = scmp.lt.s32.totalorder %s12, 2
      // Predicated region
      $region21: #{tpu_custom_call.1} parent=5 // pred_check
        %p128 = pneg %p127
      $region22: #{tpu_custom_call.1} parent=5 // pred_check_branch
        %130 = sbr.rel (%p128) target = $region24
      $region23: #{tpu_custom_call.1} parent=5 // pred_region
        // Predicated region
        $region25: #{tpu_custom_call.1} parent=23 // pred_check
          %p131 = pneg %p32
        $region26: #{tpu_custom_call.1} parent=23 // pred_check_branch
          %133 = sbr.rel (%p131) target = $region28
        $region27: #{tpu_custom_call.1} parent=23 // pred_region
          %p134 = scmp.lt.s32.totalorder %s12, 1
          %s135 = scalar_select %p134, %s12, 1
          %s136 = smul.addr %s135, 38
          %s137 = smul.addr %s136, 8
          %s138 = scalar_lea.vmem %s0, %s137
        $region28: #{tpu_custom_call.1} parent=23 // pred_fallthru
          _
      $region24: #{tpu_custom_call.1} parent=5 // pred_fallthru
        _
      %p139 = scmp.le.s32.totalorder 1, %s12
      %p140 = scmp.lt.s32.totalorder %s12, 3
      %p141 = pnand %p139, %p140
      %p142 = pneg %p141
      // Predicated region
      $region29: #{tpu_custom_call.1} parent=5 // pred_check
        _
      $region30: #{tpu_custom_call.1} parent=5 // pred_check_branch
        %144 = sbr.rel (%p141) target = $region32
      $region31: #{tpu_custom_call.1} parent=5 // pred_region
        %s145 = ssub.s32 %s12, 1
        %p146 = scmp.lt.s32.totalorder %s17, 1
        %s147 = scalar_select %p146, %s17, 1
        %s148 = smul.addr %s147, 38
        %s149 = smul.addr %s148, 8
        %s150 = scalar_lea.vmem %s0, %s149
        %p151 = pneg %p38
        %p152 = pneg %p35
        %p153 = pneg %p59
        %p154 = pneg %p56
        %p155 = pneg %p80
        %p156 = pneg %p77
        %p157 = pneg %p106
        %p158 = pneg %p103
        %s159 = sand.u32 %s93, 1
        %s160 = scalar_lea.sflag [#allocation3], %s159
        %s161 = sand.u32 %s93, 1
        %s162 = smul.addr %s161, 32
        %s163 = scalar_lea.vmem [#allocation2], %s162
        %p164 = scmp.lt.s32.totalorder %s17, 1
        %s165 = scalar_select %p164, %s17, 1
        %s166 = smul.addr %s165, 38
        %s167 = smul.addr %s166, 8
        %s168 = scalar_lea.vmem %s0, %s167
        %v169 = vld [vmem:[%s1] sm:$0xff]
        %v170 = vld [vmem:[%s1 + $0x8] sm:$0xff]
        %v171 = vld [vmem:[%s1 + $0x10] sm:$0xff]
        %v172 = vld [vmem:[%s1 + $0x18] sm:$0xff]
        %v173 = vld [vmem:[%s2] sm:$0xff]
        %v174 = vld [vmem:[%s2 + $0x8] sm:$0xff]
        %v175 = vld [vmem:[%s168] sm:$0xff]
        %v176 = vld [vmem:[%s168 + $0x8] sm:$0xff]
        %v177 = vld [vmem:[%s168 + $0x10] sm:$0xff]
        %v178 = vld [vmem:[%s168 + $0x18] sm:$0xff]
        %v179 = vld [vmem:[%s168 + $0x20] sm:$0xff]
        %v180 = vld [vmem:[%s168 + $0x28] sm:$0xff]
        %v181 = vld [vmem:[%s168 + $0x30] sm:$0xff]
        %v182 = vld [vmem:[%s168 + $0x38] sm:$0xff]
        %v183 = vld [vmem:[%s168 + $0x40] sm:$0xff]
        %v184 = vld [vmem:[%s168 + $0x48] sm:$0xff]
        %v185 = vld [vmem:[%s168 + $0x50] sm:$0xff]
        %v186 = vld [vmem:[%s168 + $0x58] sm:$0xff]
        %v187 = vld [vmem:[%s168 + $0x60] sm:$0xff]
        %v188 = vld [vmem:[%s168 + $0x68] sm:$0xff]
        %v189 = vld [vmem:[%s168 + $0x70] sm:$0xff]
        %v190 = vld [vmem:[%s168 + $0x78] sm:$0xff]
        %v191 = vld [vmem:[%s168 + $0x80] sm:$0xff]
        %v192 = vld [vmem:[%s168 + $0x88] sm:$0xff]
        %v193 = vld [vmem:[%s168 + $0x90] sm:$0xff]
        %v194 = vld [vmem:[%s168 + $0x98] sm:$0xff]
        %v195 = vld [vmem:[%s168 + $0xa0] sm:$0xff]
        %v196 = vld [vmem:[%s168 + $0xa8] sm:$0xff]
        %v197 = vld [vmem:[%s168 + $0xb0] sm:$0xff]
        %v198 = vld [vmem:[%s168 + $0xb8] sm:$0xff]
        %v199 = vld [vmem:[%s168 + $0xc0] sm:$0xff]
        %v200 = vld [vmem:[%s168 + $0xc8] sm:$0xff]
        %v201 = vld [vmem:[%s168 + $0xd0] sm:$0xff]
        %v202 = vld [vmem:[%s168 + $0xd8] sm:$0xff]
        %v203 = vld [vmem:[%s168 + $0xe0] sm:$0xff]
        %v204 = vld [vmem:[%s168 + $0xe8] sm:$0xff]
        %v205 = vld [vmem:[%s168 + $0xf0] sm:$0xff]
        %v206 = vld [vmem:[%s168 + $0xf8] sm:$0xff]
        %v207 = vld [vmem:[%s168 + $0x100] sm:$0xff]
        %v208 = vld [vmem:[%s168 + $0x108] sm:$0xff]
        %v209 = vld [vmem:[%s168 + $0x110] sm:$0xff]
        %v210 = vld [vmem:[%s168 + $0x118] sm:$0xff]
        %v211 = vld [vmem:[%s168 + $0x120] sm:$0x1]
        %v212 = vld [vmem:[%s168 + $0x128] sm:$0x1]
        %vm213 = vcmask 138240
        %v215 = vsel %vm213, %v170, 0
        %v218 = vsel %vm213, %v172, 0
        %vm220 = vcmask 1040384
        %v222 = vsel %vm220, %v211, 0
        %v225 = vsel %vm220, %v212, 0
        %227 = vmatprep.subr.mxu0 %v176
        %228 = vmatpush1.msra.mxu0 %v175
        %229 = vmatprep.subr.mxu0 %v178
        %230 = vmatpush1.msra.mxu0 %v177
        %231 = vmatprep.subr.mxu0 %v180
        %232 = vmatpush1.msra.mxu0 %v179
        %233 = vmatprep.subr.mxu0 %v182
        %234 = vmatpush1.msra.mxu0 %v181
        %235 = vmatprep.subr.mxu0 %v184
        %236 = vmatpush1.msra.mxu0 %v183
        %237 = vmatprep.subr.mxu0 %v186
        %238 = vmatpush1.msra.mxu0 %v185
        %239 = vmatprep.subr.mxu0 %v188
        %240 = vmatpush1.msra.mxu0 %v187
        %241 = vmatprep.subr.mxu0 %v190
        %242 = vmatpush1.msra.mxu0 %v189
        %243 = vmatprep.subr.mxu0 %v192
        %244 = vmatpush1.msra.mxu0 %v191
        %245 = vmatprep.subr.mxu0 %v194
        %246 = vmatpush1.msra.mxu0 %v193
        %247 = vmatprep.subr.mxu0 %v196
        %248 = vmatpush1.msra.mxu0 %v195
        %249 = vmatprep.subr.mxu0 %v198
        %250 = vmatpush1.msra.mxu0 %v197
        %251 = vmatprep.subr.mxu0 %v200
        %252 = vmatpush1.msra.mxu0 %v199
        %253 = vmatprep.subr.mxu0 %v202
        %254 = vmatpush1.msra.mxu0 %v201
        %255 = vmatprep.subr.mxu0 %v204
        %256 = vmatpush1.msra.mxu0 %v203
        %257 = vmatprep.subr.mxu0 %v206
        %258 = vmatpush1.msra.mxu0 %v205
        %259 = vmatprep.subr.mxu0 %v208
        %260 = vmatpush1.msra.mxu0 %v207
        %261 = vmatprep.subr.mxu0 %v210
        %262 = vmatpush1.msra.mxu0 %v209
        %263 = vmatprep.subr.mxu0 %v225
        %264 = vmatpush1.msra.mxu0 %v222
        %265 = vmatprep.subr.mxu0 0.0
        %266 = vmatpush1.msra.mxu0 0.0
        %267 = vmatprep.subr.mxu0 0.0
        %268 = vmatpush1.msra.mxu0 0.0
        %269 = vmatprep.subr.mxu0 0.0
        %270 = vmatpush1.msra.mxu0 0.0
        %271 = vmatprep.subr.mxu0 0.0
        %272 = vmatpush1.msra.mxu0 0.0
        %273 = vmatprep.subr.mxu0 0.0
        %274 = vmatpush1.msra.mxu0 0.0
        %275 = vmatprep.subr.mxu0 0.0
        %276 = vmatpush1.msra.mxu0 0.0
        %277 = vmatprep.subr.mxu0 0.0
        %278 = vmatpush1.msra.mxu0 0.0
        %279 = vmatprep.subr.mxu0 0.0
        %280 = vmatpush1.msra.mxu0 0.0
        %281 = vmatprep.subr.mxu0 0.0
        %282 = vmatpush1.msra.mxu0 0.0
        %283 = vmatprep.subr.mxu0 0.0
        %284 = vmatpush1.msra.mxu0 0.0
        %285 = vmatprep.subr.mxu0 0.0
        %286 = vmatpush1.msra.mxu0 0.0
        %287 = vmatprep.subr.mxu0 0.0
        %288 = vmatpush1.msra.mxu0 0.0
        %289 = vmatprep.subr.mxu0 0.0
        %290 = vmatpush1.msra.mxu0 0.0
        %291 = vmatprep.mubr.f32.mxu0 %v215
        %292 = vmatmul.mubr.f32.gmra.mrb[0].mxu0 %v169
        %v293 = vpop.f32.mrb[0].mxu0
        %v294 = vadd.f32 0.0, %v293
        %v295 = vpop.f32.mrb[0].mxu0
        %v296 = vadd.f32 0.0, %v295
        %297 = vmatprep.mubr.f32.mxu0 %v218
        %298 = vmatmul.mubr.f32.gmra.mrb[0].mxu0 %v171
        %v299 = vpop.f32.mrb[0].mxu0
        %v300 = vadd.f32 0.0, %v299
        %v301 = vpop.f32.mrb[0].mxu0
        %v302 = vadd.f32 0.0, %v301
        %303 = vdwg.mxu0
        %v304 = vmax.f32 %v294, 0.0
        %v305 = vmax.f32 %v296, 0.0
        %v306 = vmax.f32 %v300, 0.0
        %v307 = vmax.f32 %v302, 0.0
        %v308 = vadd.f32 %v304, %v305
        %309 = vadd.xlane.f32.xlu0 %v308
        %v310 = vpop.xlane.xlu0 %309
        %v311 = vadd.f32 %v306, %v307
        %312 = vadd.xlane.f32.xlu0 %v311
        %v313 = vpop.xlane.xlu0 %312
        %v314 = vmul.f32 %v304, %v304
        %v315 = vmul.f32 %v305, %v305
        %v316 = vmul.f32 %v306, %v306
        %v317 = vmul.f32 %v307, %v307
        %v318 = vadd.f32 %v314, %v315
        %319 = vadd.xlane.f32.xlu0 %v318
        %v320 = vpop.xlane.xlu0 %319
        %v321 = vadd.f32 %v316, %v317
        %322 = vadd.xlane.f32.xlu0 %v321
        %v323 = vpop.xlane.xlu0 %322
        %v324 = vmul.f32 %v310, 0.00390625
        %v325 = vmul.f32 %v313, 0.00390625
        %v326 = vmul.f32 %v320, 0.00390625
        %v327 = vmul.f32 %v323, 0.00390625
        %v328 = vmul.f32 %v324, %v324
        %v329 = vmul.f32 %v325, %v325
        %v330 = vsub.f32 %v326, %v328
        %v331 = vsub.f32 %v327, %v329
        %v332 = vmax.f32 %v330, 0.0
        %v333 = vmax.f32 %v331, 0.0
        %v334 = vadd.f32 %v332, 1e-05
        %v335 = vadd.f32 %v333, 1e-05
        %v336 = vrsqrt.pop %v334
        %v337 = vrsqrt.pop %v335
        %v338 = vmul.f32 %v173, %v336
        %v339 = vmul.f32 %v174, %v337
        %v340 = vmul.f32 %v324, %v338
        %v341 = vmul.f32 %v325, %v339
        %344 = vrot.lane.b32.xlu0 %v340, 1
        %v345 = vpop.permute.xlu0 %344
        %346 = vrot.lane.b32.xlu0 %v341, 1
        %v347 = vpop.permute.xlu0 %346
        %v350 = vsub.f32 %v173, %v345
        %v351 = vsub.f32 %v174, %v347
        %353 = vset.pattern.permute.xlu0 0
        %354 = vperm.xlu0 %353, %v338
        %v355 = vpop.permute.xlu0 %354
        %358 = vset.pattern.permute.xlu0 0
        %359 = vperm.xlu0 %358, %v339
        %v360 = vpop.permute.xlu0 %359
        %v362 = vmul.f32 %v304, %v355
        %v363 = vmul.f32 %v305, %v355
        %v364 = vmul.f32 %v306, %v360
        %v365 = vmul.f32 %v307, %v360
        %367 = vset.pattern.permute.xlu0 1
        %368 = vperm.xlu0 %367, %v350
        %v369 = vpop.permute.xlu0 %368
        %372 = vset.pattern.permute.xlu0 1
        %373 = vperm.xlu0 %372, %v351
        %v374 = vpop.permute.xlu0 %373
        %v376 = vadd.f32 %v362, %v369
        %v377 = vadd.f32 %v363, %v369
        %v378 = vadd.f32 %v364, %v374
        %v379 = vadd.f32 %v365, %v374
        %380 = vst [vmem:[%s163] sm:$0xff] %v376
        %381 = vst [vmem:[%s163 + $0x8] sm:$0xff] %v377
        %382 = vst [vmem:[%s163 + $0x10] sm:$0xff] %v378
        %383 = vst [vmem:[%s163 + $0x18] sm:$0xff] %v379
        %s384 = sand.u32 %s93, 1
        %s385 = scalar_lea.sflag [#allocation3], %s384
        %s386 = sand.u32 %s93, 1
        %s387 = smul.addr %s386, 32
        %s388 = scalar_lea.vmem [#allocation2], %s387
        // Predicated region
        $region33: #{tpu_custom_call.1} parent=31 // pred_check
          %p389 = pneg %p103
        $region34: #{tpu_custom_call.1} parent=31 // pred_check_branch
          %391 = sbr.rel (%p389) target = $region36
        $region35: #{tpu_custom_call.1} parent=31 // pred_region
          %s393 = ssub.s32 512, 512
          %394 = vsyncadd %s385, %s393
          %s395 = smul.addr %s17, 4
          %s396 = smul.addr %s395, 128
          %s397 = scalar_lea.hbm %s3, %s396
          %s398 = sshll.u32 %s388, 4
          %s399 = int_to_ptr.vmem [resolvable:$true] %s398
          %404 = dma.vmem_to_hbm [thread:$0]  %s399, 512, %s397, %s385, 256, 256, 16
        $region36: #{tpu_custom_call.1} parent=31 // pred_fallthru
          _
      $region32: #{tpu_custom_call.1} parent=5 // pred_fallthru
        _
      %p405 = scmp.le.s32.totalorder 2, %s12
      // Predicated region
      $region37: #{tpu_custom_call.1} parent=5 // pred_check
        %p406 = pneg %p405
      $region38: #{tpu_custom_call.1} parent=5 // pred_check_branch
        %408 = sbr.rel (%p406) target = $region40
      $region39: #{tpu_custom_call.1} parent=5 // pred_region
        %s409 = ssub.s32 %s12, 2
        // Predicated region
        $region41: #{tpu_custom_call.1} parent=39 // pred_check
          %p410 = pneg %p109
        $region42: #{tpu_custom_call.1} parent=39 // pred_check_branch
          %412 = sbr.rel (%p410) target = $region44
        $region43: #{tpu_custom_call.1} parent=39 // pred_region
          %s413 = sand.u32 %s94, 1
          %s414 = scalar_lea.sflag [#allocation3], %s413
          %s415 = sand.u32 %s94, 1
          %s416 = smul.addr %s415, 32
          %s417 = scalar_lea.vmem [#allocation2], %s416
          %418 = dma.done %s414, 512
        $region44: #{tpu_custom_call.1} parent=39 // pred_fallthru
          _
      $region40: #{tpu_custom_call.1} parent=5 // pred_fallthru
        _
    $region6: #{tpu_custom_call.1} parent=1 // loop_footer
      %s16 = sadd.s32 1, %s12
    $region7: #{tpu_custom_call.1} parent=1 // loop_footer_branch
      %11 = sbr.rel target = $region3
    $region8: #{tpu_custom_call.1} parent=1 // loop_exit
      _
    %419 = vsyncpa [#allocation3], 1
    %s420 = scalar_lea.sflag [#allocation3], 1
    %421 = vsyncpa %s420, 1

</llo_original>
